<compile_context>
chip_gen: v7x
topology: tpu7x:2x2x1
jax: 0.10.0
libtpu: 0.0.40
codegen_flags: <defaults>
</compile_context>

<pallas_src>
import jax
import jax.numpy as jnp
from jax.experimental import pallas as pl
from jax.experimental.pallas import tpu as pltpu

F = 128  # padded feature width (one full lane group)


def vae_forward_kernel(x_ref, eps_ref, w_ref, b_ref, out_ref):
    """x: (TB, IN), eps: (TB, L), w: (8, F, F) bf16, b: (8, F) f32, out: (TB, F)."""
    f32, bf16 = jnp.float32, jnp.bfloat16
    tb, in_dim = x_ref.shape
    lat = eps_ref.shape[1]
    width = out_ref.shape[1]

    def dense(h, i, k_rows=None):
        # bf16 MXU matmul, f32 accumulate, f32 bias row broadcast over batch.
        w = w_ref[i] if k_rows is None else w_ref[i, :k_rows, :]
        return (jnp.dot(h.astype(bf16), w, preferred_element_type=f32)
                + b_ref[i:i + 1, :])

    x = x_ref[...]          # (TB, IN) f32
    eps = eps_ref[...]      # (TB, L)  f32

    # ---- encoder ----
    h1 = jnp.maximum(dense(x, 0, in_dim), 0.0)   # Linear(IN->H) + ReLU, lanes 0:H
    h2 = jnp.maximum(dense(h1, 1), 0.0)          # Linear(H->L)  + ReLU, lanes 0:L

    # ---- latent heads (lane placement baked into weight columns) ----
    head = dense(h2, 2)     # mu @ 0:L, logvar @ L:2L, zero elsewhere
    mu_z = dense(h2, 3)     # mu     @ 2L:3L, zero elsewhere
    lv_z = dense(h2, 4)     # logvar @ 2L:3L, zero elsewhere
    eps_z = jnp.dot(eps.astype(bf16), w_ref[7, :lat, :],
                    preferred_element_type=f32)  # eps scattered to lanes 2L:3L

    # ---- reparameterize: z = mu + eps * exp(0.5 * logvar), lanes 2L:3L ----
    # Outside 2L:3L: mu_z = 0 and eps_z = 0, so z stays exactly 0 there.
    z = mu_z + eps_z * jnp.exp(0.5 * lv_z)

    # ---- decoder ----
    d = jnp.maximum(dense(z, 5), 0.0)            # Linear(L->H) + ReLU, lanes 0:H
    xhat = jax.nn.sigmoid(dense(d, 6))           # valid @ 3L:3L+IN, 0.5 elsewhere

    lane = jax.lax.broadcasted_iota(jnp.int32, (tb, width), 1)
    xhat = jnp.where((lane >= 3 * lat) & (lane < 3 * lat + in_dim), xhat, 0.0)

    # One lane-dense, full-width, unmasked store: [mu | logvar | z | xhat | 0].
    out_ref[...] = head + z + xhat


def pack_params(params, in_dim, hidden, latent):
    """Pad/stack the six Linears into one (8, F, F) bf16 weight slab and one
    (8, F) f32 bias slab, with output-lane placement baked into the columns."""
    IN, H, L = in_dim, hidden, latent
    assert IN <= F and H <= F and 3 * L + IN <= F

    def slab(*placements):
        w = jnp.zeros((F, F), jnp.float32)
        for r0, c0, mat in placements:
            w = w.at[r0:r0 + mat.shape[0], c0:c0 + mat.shape[1]].set(
                mat.astype(jnp.float32))
        return w

    def brow(*placements):
        b = jnp.zeros((F,), jnp.float32)
        for c0, vec in placements:
            v = jnp.ravel(vec).astype(jnp.float32)
            b = b.at[c0:c0 + v.shape[0]].set(v)
        return b

    eye_l = jnp.eye(L, dtype=jnp.float32)
    W = jnp.stack([
        slab((0, 0, params["w_e1"])),                             # 0 encoder 1
        slab((0, 0, params["w_e2"])),                             # 1 encoder 2
        slab((0, 0, params["w_mu"]), (0, L, params["w_lv"])),     # 2 mu|logvar head
        slab((0, 2 * L, params["w_mu"])),                         # 3 mu    -> z lanes
        slab((0, 2 * L, params["w_lv"])),                         # 4 logvar-> z lanes
        slab((2 * L, 0, params["w_d1"])),                         # 5 decoder 1
        slab((0, 3 * L, params["w_d2"])),                         # 6 decoder 2
        slab((0, 2 * L, eye_l)),                                  # 7 eps embed
    ]).astype(jnp.bfloat16)                                       # (8, F, F)

    Bv = jnp.stack([
        brow((0, params["b_e1"])),
        brow((0, params["b_e2"])),
        brow((0, params["b_mu"]), (L, params["b_lv"])),
        brow((2 * L, params["b_mu"])),
        brow((2 * L, params["b_lv"])),
        brow((0, params["b_d1"])),
        brow((3 * L, params["b_d2"])),
        jnp.zeros((F,), jnp.float32),
    ])                                                            # (8, F)
    return W, Bv


def _pick_tile(batch):
    """Largest batch tile <= 1024 that divides B (multiple of 8 when tiled)."""
    if batch <= 1024:
        return batch                      # single grid step, full-dim block
    for t in range(1024, 7, -8):
        if batch % t == 0:
            return t
    # TODO(synk): ragged fringe tile for batches with no mult-of-8 divisor.
    return batch


def vae_forward(x, eps, packed_w, packed_b, *, tile_b=None):
    """x: (B, IN) f32, eps: (B, L) f32, packed_*: from pack_params()."""
    B, IN = x.shape
    L = eps.shape[1]
    assert 3 * L + IN <= F

    if tile_b is None:
        tile_b = _pick_tile(B)
    assert B % tile_b == 0

    cost = pl.CostEstimate(
        flops=int(2 * B * 8 * F * F),
        transcendentals=int(2 * B * F),                      # exp + sigmoid
        bytes_accessed=int(4 * (x.size + eps.size + B * F)
                           + 2 * packed_w.size + 4 * packed_b.size),
    )

    out = pl.pallas_call(
        vae_forward_kernel,
        grid=(B // tile_b,),
        in_specs=[
            pl.BlockSpec((tile_b, IN), lambda i: (i, 0)),    # x (narrow)
            pl.BlockSpec((tile_b, L), lambda i: (i, 0)),     # eps (narrow)
            pl.BlockSpec((8, F, F), lambda i: (0, 0, 0)),    # weights (bf16)
            pl.BlockSpec((8, F), lambda i: (0, 0)),          # biases (f32)
        ],
        out_specs=pl.BlockSpec((tile_b, F), lambda i: (i, 0)),
        out_shape=jax.ShapeDtypeStruct((B, F), jnp.float32),
        compiler_params=pltpu.CompilerParams(
            dimension_semantics=("parallel",)),
        cost_estimate=cost,
    )(x.astype(jnp.float32), eps.astype(jnp.float32), packed_w, packed_b)

    mu = out[:, 0:L]
    logvar = out[:, L:2 * L]
    z = out[:, 2 * L:3 * L]
    xhat = out[:, 3 * L:3 * L + IN]

    # Mirror the PyTorch module's output dict structure.
    return {
        "x_input": {"data": x},
        "x_latent": {"mu": mu, "logvar": logvar, "z": z},
        "x_output": {"data": xhat},
    }


def init_params(key, in_dim, hidden, latent):
    """Deterministic synthetic parameter init (fan-in scaled normal)."""
    ks = jax.random.split(key, 12)

    def lin(kw, kb, fan_in, fan_out):
        w = jax.random.normal(kw, (fan_in, fan_out), jnp.float32) / jnp.sqrt(fan_in)
        b = 0.1 * jax.random.normal(kb, (fan_out,), jnp.float32)
        return w, b

    w_e1, b_e1 = lin(ks[0], ks[1], in_dim, hidden)
    w_e2, b_e2 = lin(ks[2], ks[3], hidden, latent)
    w_mu, b_mu = lin(ks[4], ks[5], latent, latent)
    w_lv, b_lv = lin(ks[6], ks[7], latent, latent)
    w_d1, b_d1 = lin(ks[8], ks[9], latent, hidden)
    w_d2, b_d2 = lin(ks[10], ks[11], hidden, in_dim)
    return dict(
        w_e1=w_e1, b_e1=b_e1, w_e2=w_e2, b_e2=b_e2,
        w_mu=w_mu, b_mu=b_mu, w_lv=w_lv, b_lv=b_lv,
        w_d1=w_d1, b_d1=b_d1, w_d2=w_d2, b_d2=b_d2,
    )


if __name__ == "__main__":
    B, IN, H, L = 16, 16, 32, 8

    key = jax.random.PRNGKey(0)
    k_x, k_eps, k_p = jax.random.split(key, 3)

    x = jax.random.normal(k_x, (B, IN), jnp.float32)
    eps = jax.random.normal(k_eps, (B, L), jnp.float32)   # torch.randn_like(std)
    params = init_params(k_p, IN, H, L)
    W_packed, B_packed = pack_params(params, IN, H, L)

    out = vae_forward(x, eps, W_packed, B_packed)          # single grid step
    jax.block_until_ready(out["x_output"]["data"])

    # sanity: reference in plain JAX (unpadded f32 weights)
    def ref(x, eps, p):
        h = jnp.maximum(x @ p["w_e1"] + p["b_e1"], 0)
        h = jnp.maximum(h @ p["w_e2"] + p["b_e2"], 0)
        mu = h @ p["w_mu"] + p["b_mu"]
        lv = h @ p["w_lv"] + p["b_lv"]
        z = mu + eps * jnp.exp(0.5 * lv)
        d = jnp.maximum(z @ p["w_d1"] + p["b_d1"], 0)
        return jax.nn.sigmoid(d @ p["w_d2"] + p["b_d2"]), mu, lv, z

    xhat_r, mu_r, lv_r, z_r = ref(x, eps, params)
    # bf16 matmul operands (f32 accumulation) -> loosened tolerances.
    tol = dict(rtol=5e-2, atol=5e-2)
    assert jnp.allclose(out["x_latent"]["mu"], mu_r, **tol)
    assert jnp.allclose(out["x_latent"]["logvar"], lv_r, **tol)
    assert jnp.allclose(out["x_latent"]["z"], z_r, **tol)
    assert jnp.allclose(out["x_output"]["data"], xhat_r, **tol)

    print("KERNEL_OK")
</pallas_src>

<mosaic_0001>
module attributes {stable_mosaic.version = 11 : i64} {
  func.func @vae_forward_kernel(%arg0: i32, %arg1: memref<16x16xf32, #tpu.memory_space<vmem>>, %arg2: memref<16x8xf32, #tpu.memory_space<vmem>>, %arg3: memref<8x128x128xbf16, #tpu.memory_space<vmem>>, %arg4: memref<8x128xf32, #tpu.memory_space<vmem>>, %arg5: memref<16x128xf32, #tpu.memory_space<vmem>>) attributes {dimension_semantics = [#tpu.dimension_semantics<parallel>], iteration_bounds = array<i64: 1>, scalar_prefetch = 0 : i64, scratch_operands = 0 : i64, tpu.core_type = #tpu.core_type<tc>, window_params = [{transform_indices = @transform_0, window_bounds = array<i64: 16, 16>}, {transform_indices = @transform_1, window_bounds = array<i64: 16, 8>}, {pipeline_mode = #tpu.pipeline_mode<synchronous>, transform_indices = @transform_2, window_bounds = array<i64: 8, 128, 128>}, {pipeline_mode = #tpu.pipeline_mode<synchronous>, transform_indices = @transform_3, window_bounds = array<i64: 8, 128>}, {transform_indices = @transform_4, window_bounds = array<i64: 16, 128>}]} {
    %c0 = arith.constant 0 : index
    %c0_0 = arith.constant 0 : index
    %0 = vector.load %arg1[%c0, %c0_0] : memref<16x16xf32, #tpu.memory_space<vmem>>, vector<16x16xf32>
    %c0_1 = arith.constant 0 : index
    %c0_2 = arith.constant 0 : index
    %1 = vector.load %arg2[%c0_1, %c0_2] : memref<16x8xf32, #tpu.memory_space<vmem>>, vector<16x8xf32>
    %c0_3 = arith.constant 0 : index
    %c0_4 = arith.constant 0 : index
    %c0_5 = arith.constant 0 : index
    %2 = vector.load %arg3[%c0_3, %c0_4, %c0_5] : memref<8x128x128xbf16, #tpu.memory_space<vmem>>, vector<1x16x128xbf16>
    %3 = vector.shape_cast %2 : vector<1x16x128xbf16> to vector<16x128xbf16>
    %4 = arith.truncf %0 : vector<16x16xf32> to vector<16x16xbf16>
    %cst = arith.constant dense<0.000000e+00> : vector<16x128xf32>
    %5 = tpu.matmul %4, %3, %cst {dimension_numbers = #tpu.dot_dimension_numbers<[1], [0], [0], [1], [0, 0, 1, 1], [], []>} : vector<16x16xbf16>, vector<16x128xbf16>, vector<16x128xf32> -> vector<16x128xf32>
    %c0_6 = arith.constant 0 : index
    %c0_7 = arith.constant 0 : index
    %6 = vector.load %arg4[%c0_6, %c0_7] : memref<8x128xf32, #tpu.memory_space<vmem>>, vector<1x128xf32>
    %7 = vector.broadcast %6 : vector<1x128xf32> to vector<16x128xf32>
    %8 = arith.addf %5, %7 : vector<16x128xf32>
    %cst_8 = arith.constant 0.000000e+00 : f32
    %9 = vector.broadcast %cst_8 : f32 to vector<16x128xf32>
    %10 = arith.maximumf %8, %9 : vector<16x128xf32>
    %c1 = arith.constant 1 : index
    %c0_9 = arith.constant 0 : index
    %c0_10 = arith.constant 0 : index
    %11 = vector.load %arg3[%c1, %c0_9, %c0_10] : memref<8x128x128xbf16, #tpu.memory_space<vmem>>, vector<1x128x128xbf16>
    %12 = vector.shape_cast %11 : vector<1x128x128xbf16> to vector<128x128xbf16>
    %13 = arith.truncf %10 : vector<16x128xf32> to vector<16x128xbf16>
    %cst_11 = arith.constant dense<0.000000e+00> : vector<16x128xf32>
    %14 = tpu.matmul %13, %12, %cst_11 {dimension_numbers = #tpu.dot_dimension_numbers<[1], [0], [0], [1], [0, 0, 1, 1], [], []>} : vector<16x128xbf16>, vector<128x128xbf16>, vector<16x128xf32> -> vector<16x128xf32>
    %c1_12 = arith.constant 1 : index
    %c0_13 = arith.constant 0 : index
    %15 = vector.load %arg4[%c1_12, %c0_13] : memref<8x128xf32, #tpu.memory_space<vmem>>, vector<1x128xf32>
    %16 = vector.broadcast %15 : vector<1x128xf32> to vector<16x128xf32>
    %17 = arith.addf %14, %16 : vector<16x128xf32>
    %cst_14 = arith.constant 0.000000e+00 : f32
    %18 = vector.broadcast %cst_14 : f32 to vector<16x128xf32>
    %19 = arith.maximumf %17, %18 : vector<16x128xf32>
    %c2 = arith.constant 2 : index
    %c0_15 = arith.constant 0 : index
    %c0_16 = arith.constant 0 : index
    %20 = vector.load %arg3[%c2, %c0_15, %c0_16] : memref<8x128x128xbf16, #tpu.memory_space<vmem>>, vector<1x128x128xbf16>
    %21 = vector.shape_cast %20 : vector<1x128x128xbf16> to vector<128x128xbf16>
    %22 = arith.truncf %19 : vector<16x128xf32> to vector<16x128xbf16>
    %cst_17 = arith.constant dense<0.000000e+00> : vector<16x128xf32>
    %23 = tpu.matmul %22, %21, %cst_17 {dimension_numbers = #tpu.dot_dimension_numbers<[1], [0], [0], [1], [0, 0, 1, 1], [], []>} : vector<16x128xbf16>, vector<128x128xbf16>, vector<16x128xf32> -> vector<16x128xf32>
    %c2_18 = arith.constant 2 : index
    %c0_19 = arith.constant 0 : index
    %24 = vector.load %arg4[%c2_18, %c0_19] : memref<8x128xf32, #tpu.memory_space<vmem>>, vector<1x128xf32>
    %25 = vector.broadcast %24 : vector<1x128xf32> to vector<16x128xf32>
    %26 = arith.addf %23, %25 : vector<16x128xf32>
    %c3 = arith.constant 3 : index
    %c0_20 = arith.constant 0 : index
    %c0_21 = arith.constant 0 : index
    %27 = vector.load %arg3[%c3, %c0_20, %c0_21] : memref<8x128x128xbf16, #tpu.memory_space<vmem>>, vector<1x128x128xbf16>
    %28 = vector.shape_cast %27 : vector<1x128x128xbf16> to vector<128x128xbf16>
    %29 = arith.truncf %19 : vector<16x128xf32> to vector<16x128xbf16>
    %cst_22 = arith.constant dense<0.000000e+00> : vector<16x128xf32>
    %30 = tpu.matmul %29, %28, %cst_22 {dimension_numbers = #tpu.dot_dimension_numbers<[1], [0], [0], [1], [0, 0, 1, 1], [], []>} : vector<16x128xbf16>, vector<128x128xbf16>, vector<16x128xf32> -> vector<16x128xf32>
    %c3_23 = arith.constant 3 : index
    %c0_24 = arith.constant 0 : index
    %31 = vector.load %arg4[%c3_23, %c0_24] : memref<8x128xf32, #tpu.memory_space<vmem>>, vector<1x128xf32>
    %32 = vector.broadcast %31 : vector<1x128xf32> to vector<16x128xf32>
    %33 = arith.addf %30, %32 : vector<16x128xf32>
    %c4 = arith.constant 4 : index
    %c0_25 = arith.constant 0 : index
    %c0_26 = arith.constant 0 : index
    %34 = vector.load %arg3[%c4, %c0_25, %c0_26] : memref<8x128x128xbf16, #tpu.memory_space<vmem>>, vector<1x128x128xbf16>
    %35 = vector.shape_cast %34 : vector<1x128x128xbf16> to vector<128x128xbf16>
    %36 = arith.truncf %19 : vector<16x128xf32> to vector<16x128xbf16>
    %cst_27 = arith.constant dense<0.000000e+00> : vector<16x128xf32>
    %37 = tpu.matmul %36, %35, %cst_27 {dimension_numbers = #tpu.dot_dimension_numbers<[1], [0], [0], [1], [0, 0, 1, 1], [], []>} : vector<16x128xbf16>, vector<128x128xbf16>, vector<16x128xf32> -> vector<16x128xf32>
    %c4_28 = arith.constant 4 : index
    %c0_29 = arith.constant 0 : index
    %38 = vector.load %arg4[%c4_28, %c0_29] : memref<8x128xf32, #tpu.memory_space<vmem>>, vector<1x128xf32>
    %39 = vector.broadcast %38 : vector<1x128xf32> to vector<16x128xf32>
    %40 = arith.addf %37, %39 : vector<16x128xf32>
    %41 = arith.truncf %1 : vector<16x8xf32> to vector<16x8xbf16>
    %c7 = arith.constant 7 : index
    %c0_30 = arith.constant 0 : index
    %c0_31 = arith.constant 0 : index
    %42 = vector.load %arg3[%c7, %c0_30, %c0_31] : memref<8x128x128xbf16, #tpu.memory_space<vmem>>, vector<1x8x128xbf16>
    %43 = vector.shape_cast %42 : vector<1x8x128xbf16> to vector<8x128xbf16>
    %cst_32 = arith.constant dense<0.000000e+00> : vector<16x128xf32>
    %44 = tpu.matmul %41, %43, %cst_32 {dimension_numbers = #tpu.dot_dimension_numbers<[1], [0], [0], [1], [0, 0, 1, 1], [], []>} : vector<16x8xbf16>, vector<8x128xbf16>, vector<16x128xf32> -> vector<16x128xf32>
    %cst_33 = arith.constant 5.000000e-01 : f32
    %45 = vector.broadcast %cst_33 : f32 to vector<16x128xf32>
    %46 = arith.mulf %45, %40 : vector<16x128xf32>
    %47 = math.exp %46 : vector<16x128xf32>
    %48 = arith.mulf %44, %47 : vector<16x128xf32>
    %49 = arith.addf %33, %48 : vector<16x128xf32>
    %c5 = arith.constant 5 : index
    %c0_34 = arith.constant 0 : index
    %c0_35 = arith.constant 0 : index
    %50 = vector.load %arg3[%c5, %c0_34, %c0_35] : memref<8x128x128xbf16, #tpu.memory_space<vmem>>, vector<1x128x128xbf16>
    %51 = vector.shape_cast %50 : vector<1x128x128xbf16> to vector<128x128xbf16>
    %52 = arith.truncf %49 : vector<16x128xf32> to vector<16x128xbf16>
    %cst_36 = arith.constant dense<0.000000e+00> : vector<16x128xf32>
    %53 = tpu.matmul %52, %51, %cst_36 {dimension_numbers = #tpu.dot_dimension_numbers<[1], [0], [0], [1], [0, 0, 1, 1], [], []>} : vector<16x128xbf16>, vector<128x128xbf16>, vector<16x128xf32> -> vector<16x128xf32>
    %c5_37 = arith.constant 5 : index
    %c0_38 = arith.constant 0 : index
    %54 = vector.load %arg4[%c5_37, %c0_38] : memref<8x128xf32, #tpu.memory_space<vmem>>, vector<1x128xf32>
    %55 = vector.broadcast %54 : vector<1x128xf32> to vector<16x128xf32>
    %56 = arith.addf %53, %55 : vector<16x128xf32>
    %cst_39 = arith.constant 0.000000e+00 : f32
    %57 = vector.broadcast %cst_39 : f32 to vector<16x128xf32>
    %58 = arith.maximumf %56, %57 : vector<16x128xf32>
    %c6 = arith.constant 6 : index
    %c0_40 = arith.constant 0 : index
    %c0_41 = arith.constant 0 : index
    %59 = vector.load %arg3[%c6, %c0_40, %c0_41] : memref<8x128x128xbf16, #tpu.memory_space<vmem>>, vector<1x128x128xbf16>
    %60 = vector.shape_cast %59 : vector<1x128x128xbf16> to vector<128x128xbf16>
    %61 = arith.truncf %58 : vector<16x128xf32> to vector<16x128xbf16>
    %cst_42 = arith.constant dense<0.000000e+00> : vector<16x128xf32>
    %62 = tpu.matmul %61, %60, %cst_42 {dimension_numbers = #tpu.dot_dimension_numbers<[1], [0], [0], [1], [0, 0, 1, 1], [], []>} : vector<16x128xbf16>, vector<128x128xbf16>, vector<16x128xf32> -> vector<16x128xf32>
    %c6_43 = arith.constant 6 : index
    %c0_44 = arith.constant 0 : index
    %63 = vector.load %arg4[%c6_43, %c0_44] : memref<8x128xf32, #tpu.memory_space<vmem>>, vector<1x128xf32>
    %64 = vector.broadcast %63 : vector<1x128xf32> to vector<16x128xf32>
    %65 = arith.addf %62, %64 : vector<16x128xf32>
    %66 = arith.negf %65 : vector<16x128xf32>
    %67 = math.exp %66 : vector<16x128xf32>
    %cst_45 = arith.constant 1.000000e+00 : f32
    %68 = vector.broadcast %cst_45 : f32 to vector<16x128xf32>
    %69 = arith.addf %68, %67 : vector<16x128xf32>
    %70 = arith.divf %68, %69 : vector<16x128xf32>
    %71 = tpu.iota {dimensions = array<i32: 1>} : vector<16x128xi32>
    %c24_i32 = arith.constant 24 : i32
    %72 = vector.broadcast %c24_i32 : i32 to vector<16x128xi32>
    %73 = arith.cmpi sge, %71, %72 : vector<16x128xi32>
    %c40_i32 = arith.constant 40 : i32
    %74 = vector.broadcast %c40_i32 : i32 to vector<16x128xi32>
    %75 = arith.cmpi slt, %71, %74 : vector<16x128xi32>
    %76 = arith.andi %73, %75 : vector<16x128xi1>
    %cst_46 = arith.constant 0.000000e+00 : f32
    %77 = vector.broadcast %cst_46 : f32 to vector<16x128xf32>
    %78 = arith.select %76, %70, %77 : vector<16x128xi1>, vector<16x128xf32>
    %79 = arith.addf %26, %49 : vector<16x128xf32>
    %80 = arith.addf %79, %78 : vector<16x128xf32>
    %c0_47 = arith.constant 0 : index
    %c0_48 = arith.constant 0 : index
    %81 = vector.load %arg5[%c0_47, %c0_48] : memref<16x128xf32, #tpu.memory_space<vmem>>, vector<16x128xf32>
    tpu.vector_store %arg5[%c0_47, %c0_48], %80 {strides = array<i32>} : memref<16x128xf32, #tpu.memory_space<vmem>>, vector<16x128xf32>,
    return
  }
  func.func @transform_0(%arg0: i32) -> (i32, i32) {
    %c0_i32 = arith.constant 0 : i32
    %c0_i32_0 = arith.constant 0 : i32
    return %arg0, %c0_i32 : i32, i32
  }
  func.func @transform_1(%arg0: i32) -> (i32, i32) {
    %c0_i32 = arith.constant 0 : i32
    %c0_i32_0 = arith.constant 0 : i32
    return %arg0, %c0_i32 : i32, i32
  }
  func.func @transform_2(%arg0: i32) -> (i32, i32, i32) {
    %c0_i32 = arith.constant 0 : i32
    %c0_i32_0 = arith.constant 0 : i32
    %c0_i32_1 = arith.constant 0 : i32
    %c0_i32_2 = arith.constant 0 : i32
    return %c0_i32, %c0_i32_0, %c0_i32_1 : i32, i32, i32
  }
  func.func @transform_3(%arg0: i32) -> (i32, i32) {
    %c0_i32 = arith.constant 0 : i32
    %c0_i32_0 = arith.constant 0 : i32
    %c0_i32_1 = arith.constant 0 : i32
    return %c0_i32, %c0_i32_0 : i32, i32
  }
  func.func @transform_4(%arg0: i32) -> (i32, i32) {
    %c0_i32 = arith.constant 0 : i32
    %c0_i32_0 = arith.constant 0 : i32
    return %arg0, %c0_i32 : i32, i32
  }
}

</mosaic_0001>

<llo_original>
// kernel: tpu_custom_call.1
$region0: #{tpu_custom_call.1}
  #allocation0 [shape = 'u32[]', space=smem, size = 0x4, offset = 0x4, fixed_abs, tag = 'smem constant byte address 0x4 - core index']
  #allocation1 [shape = 'u32[144,128]{1,0:T(1,128)}', space=vmem, size = 0x12000, scoped, tag = 'internal scratch']
  %s0 = inlined_call_operand.vmem [shape: f32[16,16], index: 0, kind: input, shape index: {}]
  %s1 = inlined_call_operand.vmem [shape: f32[16,8], index: 1, kind: input, shape index: {}]
  %s2 = inlined_call_operand.hbm [shape: bf16[8,128,128], index: 2, kind: input, shape index: {}]
  %s3 = inlined_call_operand.vmem [shape: f32[8,128], index: 3, kind: input, shape index: {}]
  %s4 = inlined_call_operand.hbm [shape: f32[16,128], index: 4, kind: output, shape index: {}]
  %s5 = sld [smem:[#allocation0]]
  $region30: #{tpu_custom_call.1} parent=0
    _
  %s7 = ssub.s32 1, %s5
  %s8 = scalar_select 0, %s7, %s5
  $region1: #{tpu_custom_call.1} parent=0
    #allocation2 [shape = 'u8[262144]{0}', space=vmem, size = 0x40000, scoped, tag = 'input window, operand 2, single buffered']
    #allocation3 [shape = 's32[1]{0}', space=sflag, size = 0x4, scoped, tag = 'scoped memory for tpu_custom_call.1']
    #allocation4 [shape = 's32[1]{0}', space=sflag, size = 0x4, scoped, tag = 'scoped memory for tpu_custom_call.1']
    #allocation5 [shape = 'u8[8192]{0}', space=vmem, size = 0x2000, scoped, tag = 'output window, operand 0, single buffered']
    %9 = vsyncpa [#allocation3], 0
    %10 = vsyncpa [#allocation4], 0
    // Predicated region
    $region2: #{tpu_custom_call.1} parent=1 // pred_check
      _
    $region3: #{tpu_custom_call.1} parent=1 // pred_check_branch
      %12 = sbr.rel (0) target = $region5
    $region4: #{tpu_custom_call.1} parent=1 // pred_region
      _
    $region5: #{tpu_custom_call.1} parent=1 // pred_fallthru
      _
    // Predicated region
    $region6: #{tpu_custom_call.1} parent=1 // pred_check
      _
    $region7: #{tpu_custom_call.1} parent=1 // pred_check_branch
      %14 = sbr.rel (0) target = $region9
    $region8: #{tpu_custom_call.1} parent=1 // pred_region
      _
    $region9: #{tpu_custom_call.1} parent=1 // pred_fallthru
      _
    // Predicated region
    $region10: #{tpu_custom_call.1} parent=1 // pred_check
      _
    $region11: #{tpu_custom_call.1} parent=1 // pred_check_branch
      %16 = sbr.rel (0) target = $region13
    $region12: #{tpu_custom_call.1} parent=1 // pred_region
      %s18 = ssub.s32 8192, 8192
      %19 = vsyncadd [#allocation3], %s18
      %s20 = sshll.u32 [#allocation2], 4
      %s21 = int_to_ptr.vmem [resolvable:$true] %s20
      %26 = dma.hbm_to_vmem [thread:$0]  %s2, 8192, %s21, [#allocation3], 64, 64, 4
    $region13: #{tpu_custom_call.1} parent=1 // pred_fallthru
      _
    // Predicated region
    $region14: #{tpu_custom_call.1} parent=1 // pred_check
      _
    $region15: #{tpu_custom_call.1} parent=1 // pred_check_branch
      %28 = sbr.rel (0) target = $region17
    $region16: #{tpu_custom_call.1} parent=1 // pred_region
      _
    $region17: #{tpu_custom_call.1} parent=1 // pred_fallthru
      _
    // Predicated region
    $region18: #{tpu_custom_call.1} parent=1 // pred_check
      _
    $region19: #{tpu_custom_call.1} parent=1 // pred_check_branch
      %30 = sbr.rel (0) target = $region21
    $region20: #{tpu_custom_call.1} parent=1 // pred_region
      %31 = dma.done [#allocation3], 8192
    $region21: #{tpu_custom_call.1} parent=1 // pred_fallthru
      _
    %v33 = vld [vmem:[%s0] sm:$0xff]
    %v34 = vld [vmem:[%s0 + $0x8] sm:$0xff]
    %v35 = vld [vmem:[%s1] sm:$0xff]
    %v36 = vld [vmem:[%s1 + $0x8] sm:$0xff]
    %v37 = vld [vmem:[#allocation2] sm:$0xf]
    %v38 = vld [vmem:[#allocation2 + $0x4] sm:$0xf]
    %v39 = vpack.c.bf16 %v34, %v33
    %v40 = vld [vmem:[%s3] sm:$0x1]
    %v41 = vlaneseq
    %v42 = vshrl.u32 %v41, 7
    %v43 = vsub.s32 0, %v42
    %v44 = vrot.slane %v40, %v43
    %v47 = vunpack.c.l.b16 %v37
    %v48 = vunpack.c.l.b16 %v38
    %v49 = vpack.c.b16 %v48, %v47
    %vm51 = vcmask 130048
    %v53 = vsel %vm51, %v39, 0
    %55 = vmatprep.subr.bf16.mxu0 0
    %56 = vmatpush1.bf16.msra.mxu0 %v49
    %57 = vmatprep.subr.bf16.mxu0 0
    %58 = vmatpush1.bf16.msra.mxu0 0
    %59 = vmatprep.subr.bf16.mxu0 0
    %60 = vmatpush1.bf16.msra.mxu0 0
    %61 = vmatprep.subr.bf16.mxu0 0
    %62 = vmatpush1.bf16.msra.mxu0 0
    %63 = vmatprep.subr.bf16.mxu0 0
    %64 = vmatpush1.bf16.msra.mxu0 0
    %65 = vmatprep.subr.bf16.mxu0 0
    %66 = vmatpush1.bf16.msra.mxu0 0
    %67 = vmatprep.subr.bf16.mxu0 0
    %68 = vmatpush1.bf16.msra.mxu0 0
    %69 = vmatprep.subr.bf16.mxu0 0
    %70 = vmatpush1.bf16.msra.mxu0 0
    %71 = vmatprep.subr.bf16.mxu0 0
    %72 = vmatpush1.bf16.msra.mxu0 0
    %73 = vmatprep.subr.bf16.mxu0 0
    %74 = vmatpush1.bf16.msra.mxu0 0
    %75 = vmatprep.subr.bf16.mxu0 0
    %76 = vmatpush1.bf16.msra.mxu0 0
    %77 = vmatprep.subr.bf16.mxu0 0
    %78 = vmatpush1.bf16.msra.mxu0 0
    %79 = vmatprep.subr.bf16.mxu0 0
    %80 = vmatpush1.bf16.msra.mxu0 0
    %81 = vmatprep.subr.bf16.mxu0 0
    %82 = vmatpush1.bf16.msra.mxu0 0
    %83 = vmatprep.subr.bf16.mxu0 0
    %84 = vmatpush1.bf16.msra.mxu0 0
    %85 = vmatprep.subr.bf16.mxu0 0
    %86 = vmatpush1.bf16.msra.mxu0 0
    %87 = vmatprep.mubr.bf16.mxu0 0
    %88 = vmatmul.mubr.bf16.gmra.mrb[0].mxu0 %v53
    %v89 = vpop.f32.mrb[0].mxu0
    %v90 = vadd.f32 %v44, %v89
    %v91 = vpop.f32.mrb[0].mxu0
    %v92 = vpop.f32.mrb[0].mxu0
    %v93 = vadd.f32 %v44, %v92
    %v94 = vpop.f32.mrb[0].mxu0
    %95 = vdwg.mxu0
    %v96 = vmax.f32 %v90, 0.0
    %v97 = vmax.f32 %v93, 0.0
    %s98 = scalar_lea.vmem [#allocation2], 64
    %v99 = vld [vmem:[%s98] sm:$0xf]
    %v100 = vld [vmem:[%s98 + $0x4] sm:$0xf]
    %v101 = vld [vmem:[%s98 + $0x8] sm:$0xf]
    %v102 = vld [vmem:[%s98 + $0xc] sm:$0xf]
    %v103 = vld [vmem:[%s98 + $0x10] sm:$0xf]
    %v104 = vld [vmem:[%s98 + $0x14] sm:$0xf]
    %v105 = vld [vmem:[%s98 + $0x18] sm:$0xf]
    %v106 = vld [vmem:[%s98 + $0x1c] sm:$0xf]
    %v107 = vld [vmem:[%s98 + $0x20] sm:$0xf]
    %v108 = vld [vmem:[%s98 + $0x24] sm:$0xf]
    %v109 = vld [vmem:[%s98 + $0x28] sm:$0xf]
    %v110 = vld [vmem:[%s98 + $0x2c] sm:$0xf]
    %v111 = vld [vmem:[%s98 + $0x30] sm:$0xf]
    %v112 = vld [vmem:[%s98 + $0x34] sm:$0xf]
    %v113 = vld [vmem:[%s98 + $0x38] sm:$0xf]
    %v114 = vld [vmem:[%s98 + $0x3c] sm:$0xf]
    %v115 = vpack.c.bf16 %v97, %v96
    %v116 = vld [vmem:[%s3 + $0x1] sm:$0x1]
    %v117 = vlaneseq
    %v118 = vshrl.u32 %v117, 7
    %v119 = vsub.s32 0, %v118
    %v120 = vrot.slane %v116, %v119
    %v137 = vunpack.c.l.b16 %v99
    %v138 = vunpack.c.l.b16 %v100
    %v139 = vunpack.c.l.b16 %v101
    %v140 = vunpack.c.l.b16 %v102
    %v141 = vunpack.c.l.b16 %v103
    %v142 = vunpack.c.l.b16 %v104
    %v143 = vunpack.c.l.b16 %v105
    %v144 = vunpack.c.l.b16 %v106
    %v145 = vunpack.c.l.b16 %v107
    %v146 = vunpack.c.l.b16 %v108
    %v147 = vunpack.c.l.b16 %v109
    %v148 = vunpack.c.l.b16 %v110
    %v149 = vunpack.c.l.b16 %v111
    %v150 = vunpack.c.l.b16 %v112
    %v151 = vunpack.c.l.b16 %v113
    %v152 = vunpack.c.l.b16 %v114
    %v153 = vpack.c.b16 %v138, %v137
    %v154 = vpack.c.b16 %v140, %v139
    %v155 = vpack.c.b16 %v142, %v141
    %v156 = vpack.c.b16 %v144, %v143
    %v157 = vpack.c.b16 %v146, %v145
    %v158 = vpack.c.b16 %v148, %v147
    %v159 = vpack.c.b16 %v150, %v149
    %v160 = vpack.c.b16 %v152, %v151
    %169 = vmatprep.subr.bf16.mxu0 0
    %170 = vmatpush1.bf16.msra.mxu0 %v153
    %171 = vmatprep.subr.bf16.mxu0 0
    %172 = vmatpush1.bf16.msra.mxu0 %v154
    %173 = vmatprep.subr.bf16.mxu0 0
    %174 = vmatpush1.bf16.msra.mxu0 %v155
    %175 = vmatprep.subr.bf16.mxu0 0
    %176 = vmatpush1.bf16.msra.mxu0 %v156
    %177 = vmatprep.subr.bf16.mxu0 0
    %178 = vmatpush1.bf16.msra.mxu0 %v157
    %179 = vmatprep.subr.bf16.mxu0 0
    %180 = vmatpush1.bf16.msra.mxu0 %v158
    %181 = vmatprep.subr.bf16.mxu0 0
    %182 = vmatpush1.bf16.msra.mxu0 %v159
    %183 = vmatprep.subr.bf16.mxu0 0
    %184 = vmatpush1.bf16.msra.mxu0 %v160
    %185 = vmatprep.subr.bf16.mxu0 0
    %186 = vmatpush1.bf16.msra.mxu0 0
    %187 = vmatprep.subr.bf16.mxu0 0
    %188 = vmatpush1.bf16.msra.mxu0 0
    %189 = vmatprep.subr.bf16.mxu0 0
    %190 = vmatpush1.bf16.msra.mxu0 0
    %191 = vmatprep.subr.bf16.mxu0 0
    %192 = vmatpush1.bf16.msra.mxu0 0
    %193 = vmatprep.subr.bf16.mxu0 0
    %194 = vmatpush1.bf16.msra.mxu0 0
    %195 = vmatprep.subr.bf16.mxu0 0
    %196 = vmatpush1.bf16.msra.mxu0 0
    %197 = vmatprep.subr.bf16.mxu0 0
    %198 = vmatpush1.bf16.msra.mxu0 0
    %199 = vmatprep.subr.bf16.mxu0 0
    %200 = vmatpush1.bf16.msra.mxu0 0
    %201 = vmatprep.mubr.bf16.mxu0 0
    %202 = vmatmul.mubr.bf16.gmra.mrb[0].mxu0 %v115
    %v203 = vpop.f32.mrb[0].mxu0
    %v204 = vadd.f32 %v120, %v203
    %v205 = vpop.f32.mrb[0].mxu0
    %v206 = vpop.f32.mrb[0].mxu0
    %v207 = vadd.f32 %v120, %v206
    %v208 = vpop.f32.mrb[0].mxu0
    %209 = vdwg.mxu0
    %v210 = vmax.f32 %v204, 0.0
    %v211 = vmax.f32 %v207, 0.0
    %s212 = scalar_lea.vmem [#allocation2], 128
    %v213 = vld [vmem:[%s212] sm:$0xf]
    %v214 = vld [vmem:[%s212 + $0x4] sm:$0xf]
    %v215 = vld [vmem:[%s212 + $0x8] sm:$0xf]
    %v216 = vld [vmem:[%s212 + $0xc] sm:$0xf]
    %v217 = vld [vmem:[%s212 + $0x10] sm:$0xf]
    %v218 = vld [vmem:[%s212 + $0x14] sm:$0xf]
    %v219 = vld [vmem:[%s212 + $0x18] sm:$0xf]
    %v220 = vld [vmem:[%s212 + $0x1c] sm:$0xf]
    %v221 = vld [vmem:[%s212 + $0x20] sm:$0xf]
    %v222 = vld [vmem:[%s212 + $0x24] sm:$0xf]
    %v223 = vld [vmem:[%s212 + $0x28] sm:$0xf]
    %v224 = vld [vmem:[%s212 + $0x2c] sm:$0xf]
    %v225 = vld [vmem:[%s212 + $0x30] sm:$0xf]
    %v226 = vld [vmem:[%s212 + $0x34] sm:$0xf]
    %v227 = vld [vmem:[%s212 + $0x38] sm:$0xf]
    %v228 = vld [vmem:[%s212 + $0x3c] sm:$0xf]
    %v229 = vpack.c.bf16 %v211, %v210
    %v230 = vld [vmem:[%s3 + $0x2] sm:$0x1]
    %v231 = vlaneseq
    %v232 = vshrl.u32 %v231, 7
    %v233 = vsub.s32 0, %v232
    %v234 = vrot.slane %v230, %v233
    %v251 = vunpack.c.l.b16 %v213
    %v252 = vunpack.c.l.b16 %v214
    %v253 = vunpack.c.l.b16 %v215
    %v254 = vunpack.c.l.b16 %v216
    %v255 = vunpack.c.l.b16 %v217
    %v256 = vunpack.c.l.b16 %v218
    %v257 = vunpack.c.l.b16 %v219
    %v258 = vunpack.c.l.b16 %v220
    %v259 = vunpack.c.l.b16 %v221
    %v260 = vunpack.c.l.b16 %v222
    %v261 = vunpack.c.l.b16 %v223
    %v262 = vunpack.c.l.b16 %v224
    %v263 = vunpack.c.l.b16 %v225
    %v264 = vunpack.c.l.b16 %v226
    %v265 = vunpack.c.l.b16 %v227
    %v266 = vunpack.c.l.b16 %v228
    %v267 = vpack.c.b16 %v252, %v251
    %v268 = vpack.c.b16 %v254, %v253
    %v269 = vpack.c.b16 %v256, %v255
    %v270 = vpack.c.b16 %v258, %v257
    %v271 = vpack.c.b16 %v260, %v259
    %v272 = vpack.c.b16 %v262, %v261
    %v273 = vpack.c.b16 %v264, %v263
    %v274 = vpack.c.b16 %v266, %v265
    %283 = vmatprep.subr.bf16.mxu0 0
    %284 = vmatpush1.bf16.msra.mxu0 %v267
    %285 = vmatprep.subr.bf16.mxu0 0
    %286 = vmatpush1.bf16.msra.mxu0 %v268
    %287 = vmatprep.subr.bf16.mxu0 0
    %288 = vmatpush1.bf16.msra.mxu0 %v269
    %289 = vmatprep.subr.bf16.mxu0 0
    %290 = vmatpush1.bf16.msra.mxu0 %v270
    %291 = vmatprep.subr.bf16.mxu0 0
    %292 = vmatpush1.bf16.msra.mxu0 %v271
    %293 = vmatprep.subr.bf16.mxu0 0
    %294 = vmatpush1.bf16.msra.mxu0 %v272
    %295 = vmatprep.subr.bf16.mxu0 0
    %296 = vmatpush1.bf16.msra.mxu0 %v273
    %297 = vmatprep.subr.bf16.mxu0 0
    %298 = vmatpush1.bf16.msra.mxu0 %v274
    %299 = vmatprep.subr.bf16.mxu0 0
    %300 = vmatpush1.bf16.msra.mxu0 0
    %301 = vmatprep.subr.bf16.mxu0 0
    %302 = vmatpush1.bf16.msra.mxu0 0
    %303 = vmatprep.subr.bf16.mxu0 0
    %304 = vmatpush1.bf16.msra.mxu0 0
    %305 = vmatprep.subr.bf16.mxu0 0
    %306 = vmatpush1.bf16.msra.mxu0 0
    %307 = vmatprep.subr.bf16.mxu0 0
    %308 = vmatpush1.bf16.msra.mxu0 0
    %309 = vmatprep.subr.bf16.mxu0 0
    %310 = vmatpush1.bf16.msra.mxu0 0
    %311 = vmatprep.subr.bf16.mxu0 0
    %312 = vmatpush1.bf16.msra.mxu0 0
    %313 = vmatprep.subr.bf16.mxu0 0
    %314 = vmatpush1.bf16.msra.mxu0 0
    %315 = vmatprep.mubr.bf16.mxu0 0
    %316 = vmatmul.mubr.bf16.gmra.mrb[0].mxu0 %v229
    %v317 = vpop.f32.mrb[0].mxu0
    %v318 = vadd.f32 %v234, %v317
    %v319 = vpop.f32.mrb[0].mxu0
    %v320 = vpop.f32.mrb[0].mxu0
    %v321 = vadd.f32 %v234, %v320
    %v322 = vpop.f32.mrb[0].mxu0
    %323 = vdwg.mxu0
    %s324 = scalar_lea.vmem [#allocation2], 192
    %v325 = vld [vmem:[%s324] sm:$0xf]
    %v326 = vld [vmem:[%s324 + $0x4] sm:$0xf]
    %v327 = vld [vmem:[%s324 + $0x8] sm:$0xf]
    %v328 = vld [vmem:[%s324 + $0xc] sm:$0xf]
    %v329 = vld [vmem:[%s324 + $0x10] sm:$0xf]
    %v330 = vld [vmem:[%s324 + $0x14] sm:$0xf]
    %v331 = vld [vmem:[%s324 + $0x18] sm:$0xf]
    %v332 = vld [vmem:[%s324 + $0x1c] sm:$0xf]
    %v333 = vld [vmem:[%s324 + $0x20] sm:$0xf]
    %v334 = vld [vmem:[%s324 + $0x24] sm:$0xf]
    %v335 = vld [vmem:[%s324 + $0x28] sm:$0xf]
    %v336 = vld [vmem:[%s324 + $0x2c] sm:$0xf]
    %v337 = vld [vmem:[%s324 + $0x30] sm:$0xf]
    %v338 = vld [vmem:[%s324 + $0x34] sm:$0xf]
    %v339 = vld [vmem:[%s324 + $0x38] sm:$0xf]
    %v340 = vld [vmem:[%s324 + $0x3c] sm:$0xf]
    %v341 = vld [vmem:[%s3 + $0x3] sm:$0x1]
    %v342 = vlaneseq
    %v343 = vshrl.u32 %v342, 7
    %v344 = vsub.s32 0, %v343
    %v345 = vrot.slane %v341, %v344
    %v362 = vunpack.c.l.b16 %v325
    %v363 = vunpack.c.l.b16 %v326
    %v364 = vunpack.c.l.b16 %v327
    %v365 = vunpack.c.l.b16 %v328
    %v366 = vunpack.c.l.b16 %v329
    %v367 = vunpack.c.l.b16 %v330
    %v368 = vunpack.c.l.b16 %v331
    %v369 = vunpack.c.l.b16 %v332
    %v370 = vunpack.c.l.b16 %v333
    %v371 = vunpack.c.l.b16 %v334
    %v372 = vunpack.c.l.b16 %v335
    %v373 = vunpack.c.l.b16 %v336
    %v374 = vunpack.c.l.b16 %v337
    %v375 = vunpack.c.l.b16 %v338
    %v376 = vunpack.c.l.b16 %v339
    %v377 = vunpack.c.l.b16 %v340
    %v378 = vpack.c.b16 %v363, %v362
    %v379 = vpack.c.b16 %v365, %v364
    %v380 = vpack.c.b16 %v367, %v366
    %v381 = vpack.c.b16 %v369, %v368
    %v382 = vpack.c.b16 %v371, %v370
    %v383 = vpack.c.b16 %v373, %v372
    %v384 = vpack.c.b16 %v375, %v374
    %v385 = vpack.c.b16 %v377, %v376
    %394 = vmatprep.subr.bf16.mxu0 0
    %395 = vmatpush1.bf16.msra.mxu0 %v378
    %396 = vmatprep.subr.bf16.mxu0 0
    %397 = vmatpush1.bf16.msra.mxu0 %v379
    %398 = vmatprep.subr.bf16.mxu0 0
    %399 = vmatpush1.bf16.msra.mxu0 %v380
    %400 = vmatprep.subr.bf16.mxu0 0
    %401 = vmatpush1.bf16.msra.mxu0 %v381
    %402 = vmatprep.subr.bf16.mxu0 0
    %403 = vmatpush1.bf16.msra.mxu0 %v382
    %404 = vmatprep.subr.bf16.mxu0 0
    %405 = vmatpush1.bf16.msra.mxu0 %v383
    %406 = vmatprep.subr.bf16.mxu0 0
    %407 = vmatpush1.bf16.msra.mxu0 %v384
    %408 = vmatprep.subr.bf16.mxu0 0
    %409 = vmatpush1.bf16.msra.mxu0 %v385
    %410 = vmatprep.subr.bf16.mxu0 0
    %411 = vmatpush1.bf16.msra.mxu0 0
    %412 = vmatprep.subr.bf16.mxu0 0
    %413 = vmatpush1.bf16.msra.mxu0 0
    %414 = vmatprep.subr.bf16.mxu0 0
    %415 = vmatpush1.bf16.msra.mxu0 0
    %416 = vmatprep.subr.bf16.mxu0 0
    %417 = vmatpush1.bf16.msra.mxu0 0
    %418 = vmatprep.subr.bf16.mxu0 0
    %419 = vmatpush1.bf16.msra.mxu0 0
    %420 = vmatprep.subr.bf16.mxu0 0
    %421 = vmatpush1.bf16.msra.mxu0 0
    %422 = vmatprep.subr.bf16.mxu0 0
    %423 = vmatpush1.bf16.msra.mxu0 0
    %424 = vmatprep.subr.bf16.mxu0 0
    %425 = vmatpush1.bf16.msra.mxu0 0
    %426 = vmatprep.mubr.bf16.mxu0 0
    %427 = vmatmul.mubr.bf16.gmra.mrb[0].mxu0 %v229
    %v428 = vpop.f32.mrb[0].mxu0
    %v429 = vadd.f32 %v345, %v428
    %v430 = vpop.f32.mrb[0].mxu0
    %v431 = vpop.f32.mrb[0].mxu0
    %v432 = vadd.f32 %v345, %v431
    %v433 = vpop.f32.mrb[0].mxu0
    %434 = vdwg.mxu0
    %s435 = scalar_lea.vmem [#allocation2], 256
    %v436 = vld [vmem:[%s435] sm:$0xf]
    %v437 = vld [vmem:[%s435 + $0x4] sm:$0xf]
    %v438 = vld [vmem:[%s435 + $0x8] sm:$0xf]
    %v439 = vld [vmem:[%s435 + $0xc] sm:$0xf]
    %v440 = vld [vmem:[%s435 + $0x10] sm:$0xf]
    %v441 = vld [vmem:[%s435 + $0x14] sm:$0xf]
    %v442 = vld [vmem:[%s435 + $0x18] sm:$0xf]
    %v443 = vld [vmem:[%s435 + $0x1c] sm:$0xf]
    %v444 = vld [vmem:[%s435 + $0x20] sm:$0xf]
    %v445 = vld [vmem:[%s435 + $0x24] sm:$0xf]
    %v446 = vld [vmem:[%s435 + $0x28] sm:$0xf]
    %v447 = vld [vmem:[%s435 + $0x2c] sm:$0xf]
    %v448 = vld [vmem:[%s435 + $0x30] sm:$0xf]
    %v449 = vld [vmem:[%s435 + $0x34] sm:$0xf]
    %v450 = vld [vmem:[%s435 + $0x38] sm:$0xf]
    %v451 = vld [vmem:[%s435 + $0x3c] sm:$0xf]
    %v452 = vld [vmem:[%s3 + $0x4] sm:$0x1]
    %v453 = vlaneseq
    %v454 = vshrl.u32 %v453, 7
    %v455 = vsub.s32 0, %v454
    %v456 = vrot.slane %v452, %v455
    %v473 = vunpack.c.l.b16 %v436
    %v474 = vunpack.c.l.b16 %v437
    %v475 = vunpack.c.l.b16 %v438
    %v476 = vunpack.c.l.b16 %v439
    %v477 = vunpack.c.l.b16 %v440
    %v478 = vunpack.c.l.b16 %v441
    %v479 = vunpack.c.l.b16 %v442
    %v480 = vunpack.c.l.b16 %v443
    %v481 = vunpack.c.l.b16 %v444
    %v482 = vunpack.c.l.b16 %v445
    %v483 = vunpack.c.l.b16 %v446
    %v484 = vunpack.c.l.b16 %v447
    %v485 = vunpack.c.l.b16 %v448
    %v486 = vunpack.c.l.b16 %v449
    %v487 = vunpack.c.l.b16 %v450
    %v488 = vunpack.c.l.b16 %v451
    %v489 = vpack.c.b16 %v474, %v473
    %v490 = vpack.c.b16 %v476, %v475
    %v491 = vpack.c.b16 %v478, %v477
    %v492 = vpack.c.b16 %v480, %v479
    %v493 = vpack.c.b16 %v482, %v481
    %v494 = vpack.c.b16 %v484, %v483
    %v495 = vpack.c.b16 %v486, %v485
    %v496 = vpack.c.b16 %v488, %v487
    %505 = vmatprep.subr.bf16.mxu0 0
    %506 = vmatpush1.bf16.msra.mxu0 %v489
    %507 = vmatprep.subr.bf16.mxu0 0
    %508 = vmatpush1.bf16.msra.mxu0 %v490
    %509 = vmatprep.subr.bf16.mxu0 0
    %510 = vmatpush1.bf16.msra.mxu0 %v491
    %511 = vmatprep.subr.bf16.mxu0 0
    %512 = vmatpush1.bf16.msra.mxu0 %v492
    %513 = vmatprep.subr.bf16.mxu0 0
    %514 = vmatpush1.bf16.msra.mxu0 %v493
    %515 = vmatprep.subr.bf16.mxu0 0
    %516 = vmatpush1.bf16.msra.mxu0 %v494
    %517 = vmatprep.subr.bf16.mxu0 0
    %518 = vmatpush1.bf16.msra.mxu0 %v495
    %519 = vmatprep.subr.bf16.mxu0 0
    %520 = vmatpush1.bf16.msra.mxu0 %v496
    %521 = vmatprep.subr.bf16.mxu0 0
    %522 = vmatpush1.bf16.msra.mxu0 0
    %523 = vmatprep.subr.bf16.mxu0 0
    %524 = vmatpush1.bf16.msra.mxu0 0
    %525 = vmatprep.subr.bf16.mxu0 0
    %526 = vmatpush1.bf16.msra.mxu0 0
    %527 = vmatprep.subr.bf16.mxu0 0
    %528 = vmatpush1.bf16.msra.mxu0 0
    %529 = vmatprep.subr.bf16.mxu0 0
    %530 = vmatpush1.bf16.msra.mxu0 0
    %531 = vmatprep.subr.bf16.mxu0 0
    %532 = vmatpush1.bf16.msra.mxu0 0
    %533 = vmatprep.subr.bf16.mxu0 0
    %534 = vmatpush1.bf16.msra.mxu0 0
    %535 = vmatprep.subr.bf16.mxu0 0
    %536 = vmatpush1.bf16.msra.mxu0 0
    %537 = vmatprep.mubr.bf16.mxu0 0
    %538 = vmatmul.mubr.bf16.gmra.mrb[0].mxu0 %v229
    %v539 = vpop.f32.mrb[0].mxu0
    %v540 = vadd.f32 %v456, %v539
    %v541 = vpop.f32.mrb[0].mxu0
    %v542 = vpop.f32.mrb[0].mxu0
    %v543 = vadd.f32 %v456, %v542
    %v544 = vpop.f32.mrb[0].mxu0
    %545 = vdwg.mxu0
    %v546 = vpack.c.bf16 %v36, %v35
    %s547 = scalar_lea.vmem [#allocation2], 448
    %v548 = vld [vmem:[%s547] sm:$0xf]
    %vm549 = vcmask 64512
    %v551 = vsel %vm549, %v546, 0
    %vm553 = vcmask 1043456
    %v555 = vsel %vm553, %v548, 0
    %557 = vmatprep.subr.bf16.mxu0 0
    %558 = vmatpush1.bf16.msra.mxu0 %v555
    %559 = vmatprep.subr.bf16.mxu0 0
    %560 = vmatpush1.bf16.msra.mxu0 0
    %561 = vmatprep.subr.bf16.mxu0 0
    %562 = vmatpush1.bf16.msra.mxu0 0
    %563 = vmatprep.subr.bf16.mxu0 0
    %564 = vmatpush1.bf16.msra.mxu0 0
    %565 = vmatprep.subr.bf16.mxu0 0
    %566 = vmatpush1.bf16.msra.mxu0 0
    %567 = vmatprep.subr.bf16.mxu0 0
    %568 = vmatpush1.bf16.msra.mxu0 0
    %569 = vmatprep.subr.bf16.mxu0 0
    %570 = vmatpush1.bf16.msra.mxu0 0
    %571 = vmatprep.subr.bf16.mxu0 0
    %572 = vmatpush1.bf16.msra.mxu0 0
    %573 = vmatprep.subr.bf16.mxu0 0
    %574 = vmatpush1.bf16.msra.mxu0 0
    %575 = vmatprep.subr.bf16.mxu0 0
    %576 = vmatpush1.bf16.msra.mxu0 0
    %577 = vmatprep.subr.bf16.mxu0 0
    %578 = vmatpush1.bf16.msra.mxu0 0
    %579 = vmatprep.subr.bf16.mxu0 0
    %580 = vmatpush1.bf16.msra.mxu0 0
    %581 = vmatprep.subr.bf16.mxu0 0
    %582 = vmatpush1.bf16.msra.mxu0 0
    %583 = vmatprep.subr.bf16.mxu0 0
    %584 = vmatpush1.bf16.msra.mxu0 0
    %585 = vmatprep.subr.bf16.mxu0 0
    %586 = vmatpush1.bf16.msra.mxu0 0
    %587 = vmatprep.subr.bf16.mxu0 0
    %588 = vmatpush1.bf16.msra.mxu0 0
    %589 = vmatprep.mubr.bf16.mxu0 0
    %590 = vmatmul.mubr.bf16.gmra.mrb[0].mxu0 %v551
    %v591 = vpop.f32.mrb[0].mxu0
    %v592 = vadd.f32 0.0, %v591
    %v593 = vpop.f32.mrb[0].mxu0
    %v594 = vpop.f32.mrb[0].mxu0
    %v595 = vadd.f32 0.0, %v594
    %v596 = vpop.f32.mrb[0].mxu0
    %597 = vdwg.mxu0
    %v598 = vmul.f32 %v540, 0.5
    %v599 = vmul.f32 %v543, 0.5
    %v600 = vmul.f32 %v598, 1.442695
    %v601 = vpow.pop %v600
    %v602 = vmul.f32 %v599, 1.442695
    %v603 = vpow.pop %v602
    %v604 = vmul.f32 %v592, %v601
    %v605 = vmul.f32 %v595, %v603
    %v606 = vadd.f32 %v429, %v604
    %v607 = vadd.f32 %v432, %v605
    %s608 = scalar_lea.vmem [#allocation2], 320
    %v609 = vld [vmem:[%s608] sm:$0xf]
    %v610 = vld [vmem:[%s608 + $0x4] sm:$0xf]
    %v611 = vld [vmem:[%s608 + $0x8] sm:$0xf]
    %v612 = vld [vmem:[%s608 + $0xc] sm:$0xf]
    %v613 = vld [vmem:[%s608 + $0x10] sm:$0xf]
    %v614 = vld [vmem:[%s608 + $0x14] sm:$0xf]
    %v615 = vld [vmem:[%s608 + $0x18] sm:$0xf]
    %v616 = vld [vmem:[%s608 + $0x1c] sm:$0xf]
    %v617 = vld [vmem:[%s608 + $0x20] sm:$0xf]
    %v618 = vld [vmem:[%s608 + $0x24] sm:$0xf]
    %v619 = vld [vmem:[%s608 + $0x28] sm:$0xf]
    %v620 = vld [vmem:[%s608 + $0x2c] sm:$0xf]
    %v621 = vld [vmem:[%s608 + $0x30] sm:$0xf]
    %v622 = vld [vmem:[%s608 + $0x34] sm:$0xf]
    %v623 = vld [vmem:[%s608 + $0x38] sm:$0xf]
    %v624 = vld [vmem:[%s608 + $0x3c] sm:$0xf]
    %v625 = vpack.c.bf16 %v607, %v606
    %v626 = vld [vmem:[%s3 + $0x5] sm:$0x1]
    %v627 = vlaneseq
    %v628 = vshrl.u32 %v627, 7
    %v629 = vsub.s32 0, %v628
    %v630 = vrot.slane %v626, %v629
    %v647 = vunpack.c.l.b16 %v609
    %v648 = vunpack.c.l.b16 %v610
    %v649 = vunpack.c.l.b16 %v611
    %v650 = vunpack.c.l.b16 %v612
    %v651 = vunpack.c.l.b16 %v613
    %v652 = vunpack.c.l.b16 %v614
    %v653 = vunpack.c.l.b16 %v615
    %v654 = vunpack.c.l.b16 %v616
    %v655 = vunpack.c.l.b16 %v617
    %v656 = vunpack.c.l.b16 %v618
    %v657 = vunpack.c.l.b16 %v619
    %v658 = vunpack.c.l.b16 %v620
    %v659 = vunpack.c.l.b16 %v621
    %v660 = vunpack.c.l.b16 %v622
    %v661 = vunpack.c.l.b16 %v623
    %v662 = vunpack.c.l.b16 %v624
    %v663 = vpack.c.b16 %v648, %v647
    %v664 = vpack.c.b16 %v650, %v649
    %v665 = vpack.c.b16 %v652, %v651
    %v666 = vpack.c.b16 %v654, %v653
    %v667 = vpack.c.b16 %v656, %v655
    %v668 = vpack.c.b16 %v658, %v657
    %v669 = vpack.c.b16 %v660, %v659
    %v670 = vpack.c.b16 %v662, %v661
    %679 = vmatprep.subr.bf16.mxu0 0
    %680 = vmatpush1.bf16.msra.mxu0 %v663
    %681 = vmatprep.subr.bf16.mxu0 0
    %682 = vmatpush1.bf16.msra.mxu0 %v664
    %683 = vmatprep.subr.bf16.mxu0 0
    %684 = vmatpush1.bf16.msra.mxu0 %v665
    %685 = vmatprep.subr.bf16.mxu0 0
    %686 = vmatpush1.bf16.msra.mxu0 %v666
    %687 = vmatprep.subr.bf16.mxu0 0
    %688 = vmatpush1.bf16.msra.mxu0 %v667
    %689 = vmatprep.subr.bf16.mxu0 0
    %690 = vmatpush1.bf16.msra.mxu0 %v668
    %691 = vmatprep.subr.bf16.mxu0 0
    %692 = vmatpush1.bf16.msra.mxu0 %v669
    %693 = vmatprep.subr.bf16.mxu0 0
    %694 = vmatpush1.bf16.msra.mxu0 %v670
    %695 = vmatprep.subr.bf16.mxu0 0
    %696 = vmatpush1.bf16.msra.mxu0 0
    %697 = vmatprep.subr.bf16.mxu0 0
    %698 = vmatpush1.bf16.msra.mxu0 0
    %699 = vmatprep.subr.bf16.mxu0 0
    %700 = vmatpush1.bf16.msra.mxu0 0
    %701 = vmatprep.subr.bf16.mxu0 0
    %702 = vmatpush1.bf16.msra.mxu0 0
    %703 = vmatprep.subr.bf16.mxu0 0
    %704 = vmatpush1.bf16.msra.mxu0 0
    %705 = vmatprep.subr.bf16.mxu0 0
    %706 = vmatpush1.bf16.msra.mxu0 0
    %707 = vmatprep.subr.bf16.mxu0 0
    %708 = vmatpush1.bf16.msra.mxu0 0
    %709 = vmatprep.subr.bf16.mxu0 0
    %710 = vmatpush1.bf16.msra.mxu0 0
    %711 = vmatprep.mubr.bf16.mxu0 0
    %712 = vmatmul.mubr.bf16.gmra.mrb[0].mxu0 %v625
    %v713 = vpop.f32.mrb[0].mxu0
    %v714 = vadd.f32 %v630, %v713
    %v715 = vpop.f32.mrb[0].mxu0
    %v716 = vpop.f32.mrb[0].mxu0
    %v717 = vadd.f32 %v630, %v716
    %v718 = vpop.f32.mrb[0].mxu0
    %719 = vdwg.mxu0
    %v720 = vmax.f32 %v714, 0.0
    %v721 = vmax.f32 %v717, 0.0
    %s722 = scalar_lea.vmem [#allocation2], 384
    %v723 = vld [vmem:[%s722] sm:$0xf]
    %v724 = vld [vmem:[%s722 + $0x4] sm:$0xf]
    %v725 = vld [vmem:[%s722 + $0x8] sm:$0xf]
    %v726 = vld [vmem:[%s722 + $0xc] sm:$0xf]
    %v727 = vld [vmem:[%s722 + $0x10] sm:$0xf]
    %v728 = vld [vmem:[%s722 + $0x14] sm:$0xf]
    %v729 = vld [vmem:[%s722 + $0x18] sm:$0xf]
    %v730 = vld [vmem:[%s722 + $0x1c] sm:$0xf]
    %v731 = vld [vmem:[%s722 + $0x20] sm:$0xf]
    %v732 = vld [vmem:[%s722 + $0x24] sm:$0xf]
    %v733 = vld [vmem:[%s722 + $0x28] sm:$0xf]
    %v734 = vld [vmem:[%s722 + $0x2c] sm:$0xf]
    %v735 = vld [vmem:[%s722 + $0x30] sm:$0xf]
    %v736 = vld [vmem:[%s722 + $0x34] sm:$0xf]
    %v737 = vld [vmem:[%s722 + $0x38] sm:$0xf]
    %v738 = vld [vmem:[%s722 + $0x3c] sm:$0xf]
    %v739 = vpack.c.bf16 %v721, %v720
    %v740 = vld [vmem:[%s3 + $0x6] sm:$0x1]
    %v741 = vlaneseq
    %v742 = vshrl.u32 %v741, 7
    %v743 = vsub.s32 0, %v742
    %v744 = vrot.slane %v740, %v743
    %v761 = vunpack.c.l.b16 %v723
    %v762 = vunpack.c.l.b16 %v724
    %v763 = vunpack.c.l.b16 %v725
    %v764 = vunpack.c.l.b16 %v726
    %v765 = vunpack.c.l.b16 %v727
    %v766 = vunpack.c.l.b16 %v728
    %v767 = vunpack.c.l.b16 %v729
    %v768 = vunpack.c.l.b16 %v730
    %v769 = vunpack.c.l.b16 %v731
    %v770 = vunpack.c.l.b16 %v732
    %v771 = vunpack.c.l.b16 %v733
    %v772 = vunpack.c.l.b16 %v734
    %v773 = vunpack.c.l.b16 %v735
    %v774 = vunpack.c.l.b16 %v736
    %v775 = vunpack.c.l.b16 %v737
    %v776 = vunpack.c.l.b16 %v738
    %v777 = vpack.c.b16 %v762, %v761
    %v778 = vpack.c.b16 %v764, %v763
    %v779 = vpack.c.b16 %v766, %v765
    %v780 = vpack.c.b16 %v768, %v767
    %v781 = vpack.c.b16 %v770, %v769
    %v782 = vpack.c.b16 %v772, %v771
    %v783 = vpack.c.b16 %v774, %v773
    %v784 = vpack.c.b16 %v776, %v775
    %793 = vmatprep.subr.bf16.mxu0 0
    %794 = vmatpush1.bf16.msra.mxu0 %v777
    %795 = vmatprep.subr.bf16.mxu0 0
    %796 = vmatpush1.bf16.msra.mxu0 %v778
    %797 = vmatprep.subr.bf16.mxu0 0
    %798 = vmatpush1.bf16.msra.mxu0 %v779
    %799 = vmatprep.subr.bf16.mxu0 0
    %800 = vmatpush1.bf16.msra.mxu0 %v780
    %801 = vmatprep.subr.bf16.mxu0 0
    %802 = vmatpush1.bf16.msra.mxu0 %v781
    %803 = vmatprep.subr.bf16.mxu0 0
    %804 = vmatpush1.bf16.msra.mxu0 %v782
    %805 = vmatprep.subr.bf16.mxu0 0
    %806 = vmatpush1.bf16.msra.mxu0 %v783
    %807 = vmatprep.subr.bf16.mxu0 0
    %808 = vmatpush1.bf16.msra.mxu0 %v784
    %809 = vmatprep.subr.bf16.mxu0 0
    %810 = vmatpush1.bf16.msra.mxu0 0
    %811 = vmatprep.subr.bf16.mxu0 0
    %812 = vmatpush1.bf16.msra.mxu0 0
    %813 = vmatprep.subr.bf16.mxu0 0
    %814 = vmatpush1.bf16.msra.mxu0 0
    %815 = vmatprep.subr.bf16.mxu0 0
    %816 = vmatpush1.bf16.msra.mxu0 0
    %817 = vmatprep.subr.bf16.mxu0 0
    %818 = vmatpush1.bf16.msra.mxu0 0
    %819 = vmatprep.subr.bf16.mxu0 0
    %820 = vmatpush1.bf16.msra.mxu0 0
    %821 = vmatprep.subr.bf16.mxu0 0
    %822 = vmatpush1.bf16.msra.mxu0 0
    %823 = vmatprep.subr.bf16.mxu0 0
    %824 = vmatpush1.bf16.msra.mxu0 0
    %825 = vmatprep.mubr.bf16.mxu0 0
    %826 = vmatmul.mubr.bf16.gmra.mrb[0].mxu0 %v739
    %v827 = vpop.f32.mrb[0].mxu0
    %v828 = vadd.f32 %v744, %v827
    %v829 = vpop.f32.mrb[0].mxu0
    %v830 = vpop.f32.mrb[0].mxu0
    %v831 = vadd.f32 %v744, %v830
    %v832 = vpop.f32.mrb[0].mxu0
    %833 = vdwg.mxu0
    %v834 = vxor.u32 %v828, 2147483648
    %v835 = vxor.u32 %v831, 2147483648
    %v836 = vmul.f32 %v834, 1.442695
    %v837 = vpow.pop %v836
    %v838 = vmul.f32 %v835, 1.442695
    %v839 = vpow.pop %v838
    %v840 = vadd.f32 %v837, 1.0
    %v841 = vadd.f32 %v839, 1.0
    %v842 = vrcp.pop %v840
    %v843 = vmul.f32 1.0, %v842
    %v844 = vrcp.pop %v841
    %v845 = vmul.f32 1.0, %v844
    %v846 = vlaneseq
    %v847 = vand.u32 %v846, 127
    %vm848 = vcmp.ge.s32.totalorder %v847, 24
    %vm849 = vcmp.lt.s32.totalorder %v847, 40
    %vm850 = vmand %vm848, %vm849
    %v851 = vsel %vm850, %v843, 0.0
    %v852 = vsel %vm850, %v845, 0.0
    %v853 = vadd.f32 %v318, %v606
    %v854 = vadd.f32 %v321, %v607
    %v855 = vadd.f32 %v853, %v851
    %v856 = vadd.f32 %v854, %v852
    %857 = vst [vmem:[#allocation5] sm:$0xff] %v855
    %858 = vst [vmem:[#allocation5 + $0x8] sm:$0xff] %v856
    // Predicated region
    $region22: #{tpu_custom_call.1} parent=1 // pred_check
      _
    $region23: #{tpu_custom_call.1} parent=1 // pred_check_branch
      %860 = sbr.rel (0) target = $region25
    $region24: #{tpu_custom_call.1} parent=1 // pred_region
      %s862 = ssub.s32 256, 256
      %863 = vsyncadd [#allocation4], %s862
      %s864 = sshll.u32 [#allocation5], 4
      %s865 = int_to_ptr.vmem [resolvable:$true] %s864
      %870 = dma.vmem_to_hbm [thread:$0]  %s865, 256, %s4, [#allocation4], 128, 128, 8
    $region25: #{tpu_custom_call.1} parent=1 // pred_fallthru
      _
    // Predicated region
    $region26: #{tpu_custom_call.1} parent=1 // pred_check
      _
    $region27: #{tpu_custom_call.1} parent=1 // pred_check_branch
      %872 = sbr.rel (0) target = $region29
    $region28: #{tpu_custom_call.1} parent=1 // pred_region
      %873 = dma.done [#allocation4], 256
    $region29: #{tpu_custom_call.1} parent=1 // pred_fallthru
      _
    %874 = vsyncpa [#allocation3], 1
    %875 = vsyncpa [#allocation4], 1

</llo_original>
